<compile_context>
chip_gen: v6e
topology: v6e:2x2x1
jax: 0.10.0
libtpu: 0.0.40
codegen_flags: <defaults>
</compile_context>

<pallas_src>
import functools

import jax
import jax.numpy as jnp
from jax.experimental import pallas as pl
from jax.experimental.pallas import tpu as pltpu

_MIB = 1024 * 1024


def _round_up(x, m):
    return ((x + m - 1) // m) * m


def _vmem_capacity_bytes():
    """Physical per-core VMEM; conservative (v7x, 64 MiB) fallback."""
    try:
        return int(pltpu.get_tpu_info().vmem_capacity_bytes)
    except Exception:
        return 64 * _MIB


def _patch_embed_kernel(a_ref, w_ref, b_ref, o_ref):
    # a_ref: (tm, Kp) bf16 patches, w_ref: (Kp, N) bf16 weights (VMEM-resident),
    # b_ref: (1, N) f32 bias.  Accumulate in f32 on the MXU.
    acc = jnp.dot(a_ref[...], w_ref[...], preferred_element_type=jnp.float32)
    o_ref[...] = (acc + b_ref[...]).astype(o_ref.dtype)


@functools.partial(
    jax.jit, static_argnames=("patch_size", "tubelet_size", "out_dtype"))
def patch_embed_forward(x, weight, bias, *, patch_size, tubelet_size,
                        out_dtype=None):
    """PatchEmbed forward.

    Args:
      x:      (B, C, T, H, W)           -- NCDHW, same as PyTorch.
      weight: (embed_dim, C, t, ph, pw) -- Conv3d weight.
      bias:   (embed_dim,)              -- Conv3d bias.
      out_dtype: optional output dtype (e.g. jnp.bfloat16 to halve writeback
        traffic on v6e).  Defaults to x.dtype for parity with the module.

    Returns:
      (B, num_patches, embed_dim).
    """
    B, C, T, H, W = x.shape
    ph, pw = patch_size
    t = tubelet_size
    embed_dim = weight.shape[0]

    nt, nh, nw = T // t, H // ph, W // pw
    num_patches = nt * nh * nw

    # ---- patchify (layout glue, no flops; fuses into the input DMA) -----
    # (B, C, nt, t, nh, ph, nw, pw) -> (B, nt, nh, nw, C, t, ph, pw)
    xp = x.reshape(B, C, nt, t, nh, ph, nw, pw)
    xp = xp.transpose(0, 2, 4, 6, 1, 3, 5, 7)
    K = C * t * ph * pw
    a = xp.reshape(B * num_patches, K)

    # Conv3d weight flattened over (C, t, ph, pw), transposed to (K, N).
    w = weight.reshape(embed_dim, K).T
    b = bias.reshape(1, embed_dim).astype(jnp.float32)

    # ---- lane-align K (explicit zero padding keeps the GEMM exact; do NOT
    # rely on Pallas OOB block padding for the extra K columns) ------------
    Kp = _round_up(K, 128)
    if Kp != K:
        a = jnp.pad(a, ((0, 0), (0, Kp - K)))
        w = jnp.pad(w, ((0, Kp - K), (0, 0)))

    # ---- bf16 inputs, f32 accumulation ----------------------------------
    a = a.astype(jnp.bfloat16)
    w = w.astype(jnp.bfloat16)

    M, N = B * num_patches, embed_dim
    out_dtype = jnp.dtype(out_dtype if out_dtype is not None else x.dtype)
    out_bytes = out_dtype.itemsize

    # ---- generation-aware M tile against an explicit VMEM budget --------
    vmem_cap = _vmem_capacity_bytes()
    # v7x (64 MiB/core): cap tm at 1024; v5e/v6e (128 MiB): up to 2048.
    tm_cap = 1024 if vmem_cap <= 72 * _MIB else 2048
    budget = vmem_cap - 24 * _MIB          # headroom for Mosaic scratch/sems
    fixed = 2 * (Kp * N * 2) + 2 * (8 * N * 4)        # W + bias (double-buf)
    per_row = 2 * (Kp * 2) + 2 * (N * out_bytes)      # A tile + out tile rows
    tm_fit = max((budget - fixed) // per_row, 16)
    tm = max(16, min(tm_cap, _round_up(M, 16), (tm_fit // 16) * 16))
    grid_m = pl.cdiv(M, tm)

    needed = fixed + tm * per_row
    vmem_limit = int(min(max(needed + 16 * _MIB, 32 * _MIB),
                         vmem_cap - 8 * _MIB))

    x_bytes = jnp.dtype(x.dtype).itemsize
    cost = pl.CostEstimate(
        flops=2 * M * Kp * N,
        transcendentals=0,
        bytes_accessed=(M * K * x_bytes          # x read (relayout fused)
                        + Kp * N * 2 + N * 4     # weight (bf16) + bias
                        + M * N * out_bytes),    # output write
    )

    out = pl.pallas_call(
        _patch_embed_kernel,
        out_shape=jax.ShapeDtypeStruct((M, N), out_dtype),
        grid_spec=pltpu.PrefetchScalarGridSpec(
            num_scalar_prefetch=0,
            grid=(grid_m,),
            in_specs=[
                # A tiles stream along M (double-buffered).
                pl.BlockSpec((tm, Kp), lambda i: (i, 0)),
                # Weight + bias: constant index -> fetched once, VMEM-resident.
                pl.BlockSpec((Kp, N), lambda i: (0, 0)),
                pl.BlockSpec((1, N), lambda i: (0, 0)),
            ],
            out_specs=pl.BlockSpec((tm, N), lambda i: (i, 0)),
        ),
        compiler_params=pltpu.CompilerParams(
            dimension_semantics=("parallel",),   # megacore-shardable on v7x
            vmem_limit_bytes=vmem_limit,
            # Let XLA fuse the patchify transpose / pad / bf16-cast producer
            # of `a` into the kernel's input DMA (saves a full HBM round trip
            # of the (M, K) patch matrix).
            allow_input_fusion=[True, False, False],
        ),
        cost_estimate=cost,
    )(a, w, b)

    return out.reshape(B, num_patches, embed_dim)


def _reference_patch_embed(x, weight, bias, patch_size, tubelet_size):
    """Pure-JAX reference: strided conv via conv_general_dilated (f32)."""
    t = tubelet_size
    ph, pw = patch_size
    y = jax.lax.conv_general_dilated(
        x.astype(jnp.float32), weight.astype(jnp.float32),
        window_strides=(t, ph, pw), padding="VALID",
        dimension_numbers=("NCDHW", "OIDHW", "NCDHW"),
        precision=jax.lax.Precision.HIGHEST)
    y = y + bias.astype(jnp.float32)[None, :, None, None, None]
    B, E = y.shape[0], y.shape[1]
    return y.reshape(B, E, -1).transpose(0, 2, 1)


if __name__ == "__main__":
    # Small config consistent with the module:
    #   in_chans=3, img_size=(16,16), patch_size=(8,8),
    #   num_frames=4, tubelet_size=2, embed_dim=128, batch=2
    B, C, T, H, W = 2, 3, 4, 16, 16
    patch_size = (8, 8)
    tubelet_size = 2
    embed_dim = 128

    key = jax.random.PRNGKey(0)
    kx, kw, kb = jax.random.split(key, 3)

    x = jax.random.normal(kx, (B, C, T, H, W), dtype=jnp.float32)
    weight = (jax.random.normal(
        kw, (embed_dim, C, tubelet_size, patch_size[0], patch_size[1]),
        dtype=jnp.float32) * 0.02)
    bias = jax.random.normal(kb, (embed_dim,), dtype=jnp.float32) * 0.02

    out = patch_embed_forward(
        x, weight, bias, patch_size=patch_size, tubelet_size=tubelet_size)
    out = jax.block_until_ready(out)

    ref = _reference_patch_embed(x, weight, bias, patch_size, tubelet_size)

    num_patches = (T // tubelet_size) * (H // patch_size[0]) * (W // patch_size[1])
    assert out.shape == (B, num_patches, embed_dim), out.shape
    # bf16 inputs (f32 accumulation) vs full-f32 conv reference -> ~1e-3 level.
    assert jnp.allclose(out, ref, atol=3e-2, rtol=3e-2), float(
        jnp.max(jnp.abs(out - ref)))

    print("KERNEL_OK")
</pallas_src>

<mosaic_0001>
module attributes {stable_mosaic.version = 11 : i64} {
  func.func @_patch_embed_kernel(%arg0: i32, %arg1: memref<16x384xbf16, #tpu.memory_space<vmem>>, %arg2: memref<384x128xbf16, #tpu.memory_space<vmem>>, %arg3: memref<1x128xf32, #tpu.memory_space<vmem>>, %arg4: memref<16x128xf32, #tpu.memory_space<vmem>>) attributes {dimension_semantics = [#tpu.dimension_semantics<parallel>], iteration_bounds = array<i64: 1>, scalar_prefetch = 0 : i64, scratch_operands = 0 : i64, tpu.core_type = #tpu.core_type<tc>, window_params = [{transform_indices = @transform_0, window_bounds = array<i64: 16, 384>}, {pipeline_mode = #tpu.pipeline_mode<synchronous>, transform_indices = @transform_1, window_bounds = array<i64: 384, 128>}, {pipeline_mode = #tpu.pipeline_mode<synchronous>, transform_indices = @transform_2, window_bounds = array<i64: 1, 128>}, {transform_indices = @transform_3, window_bounds = array<i64: 16, 128>}]} {
    %c0 = arith.constant 0 : index
    %c0_0 = arith.constant 0 : index
    %0 = vector.load %arg1[%c0, %c0_0] : memref<16x384xbf16, #tpu.memory_space<vmem>>, vector<16x384xbf16>
    %c0_1 = arith.constant 0 : index
    %c0_2 = arith.constant 0 : index
    %1 = vector.load %arg2[%c0_1, %c0_2] : memref<384x128xbf16, #tpu.memory_space<vmem>>, vector<384x128xbf16>
    %cst = arith.constant dense<0.000000e+00> : vector<16x128xf32>
    %2 = tpu.matmul %0, %1, %cst {dimension_numbers = #tpu.dot_dimension_numbers<[1], [0], [0], [1], [0, 0, 1, 1], [], []>} : vector<16x384xbf16>, vector<384x128xbf16>, vector<16x128xf32> -> vector<16x128xf32>
    %c0_3 = arith.constant 0 : index
    %c0_4 = arith.constant 0 : index
    %3 = vector.load %arg3[%c0_3, %c0_4] : memref<1x128xf32, #tpu.memory_space<vmem>>, vector<1x128xf32>
    %4 = vector.broadcast %3 : vector<1x128xf32> to vector<16x128xf32>
    %5 = arith.addf %2, %4 : vector<16x128xf32>
    %c0_5 = arith.constant 0 : index
    %c0_6 = arith.constant 0 : index
    %6 = vector.load %arg4[%c0_5, %c0_6] : memref<16x128xf32, #tpu.memory_space<vmem>>, vector<16x128xf32>
    tpu.vector_store %arg4[%c0_5, %c0_6], %5 {strides = array<i32>} : memref<16x128xf32, #tpu.memory_space<vmem>>, vector<16x128xf32>,
    return
  }
  func.func @transform_0(%arg0: i32) -> (i32, i32) {
    %c0_i32 = arith.constant 0 : i32
    %c0_i32_0 = arith.constant 0 : i32
    return %arg0, %c0_i32 : i32, i32
  }
  func.func @transform_1(%arg0: i32) -> (i32, i32) {
    %c0_i32 = arith.constant 0 : i32
    %c0_i32_0 = arith.constant 0 : i32
    %c0_i32_1 = arith.constant 0 : i32
    return %c0_i32, %c0_i32_0 : i32, i32
  }
  func.func @transform_2(%arg0: i32) -> (i32, i32) {
    %c0_i32 = arith.constant 0 : i32
    %c0_i32_0 = arith.constant 0 : i32
    %c0_i32_1 = arith.constant 0 : i32
    return %c0_i32, %c0_i32_0 : i32, i32
  }
  func.func @transform_3(%arg0: i32) -> (i32, i32) {
    %c0_i32 = arith.constant 0 : i32
    %c0_i32_0 = arith.constant 0 : i32
    return %arg0, %c0_i32 : i32, i32
  }
}

</mosaic_0001>

<llo_original>
// kernel: patch_embed_forward.1
$region0: #{patch_embed_forward.1}
  #allocation0 [shape = 'u32[]', space=smem, size = 0x4, offset = 0x4, fixed_abs, tag = 'smem constant byte address 0x4 - core index']
  #allocation1 [shape = 'u32[144,128]{1,0:T(1,128)}', space=vmem, size = 0x12000, scoped, tag = 'internal scratch']
  %s0 = inlined_call_operand.vmem [shape: bf16[16,384], index: 0, kind: input, shape index: {}]
  %s1 = inlined_call_operand.vmem [shape: bf16[384,128], index: 1, kind: input, shape index: {}]
  %s2 = inlined_call_operand.vmem [shape: f32[1,128], index: 2, kind: input, shape index: {}]
  %s3 = inlined_call_operand.hbm [shape: f32[16,128], index: 3, kind: output, shape index: {}]
  %s4 = sld [smem:[#allocation0]]
  $region22: #{patch_embed_forward.1} parent=0
    _
  %s6 = ssub.s32 1, %s4
  %s7 = scalar_select 0, %s6, %s4
  $region1: #{patch_embed_forward.1} parent=0
    #allocation2 [shape = 'u8[8192]{0}', space=vmem, size = 0x2000, scoped, tag = 'output window, operand 0, single buffered']
    #allocation3 [shape = 's32[1]{0}', space=sflag, size = 0x4, scoped, tag = 'scoped memory for patch_embed_forward.1']
    %8 = vsyncpa [#allocation3], 0
    // Predicated region
    $region2: #{patch_embed_forward.1} parent=1 // pred_check
      _
    $region3: #{patch_embed_forward.1} parent=1 // pred_check_branch
      %10 = sbr.rel (0) target = $region5
    $region4: #{patch_embed_forward.1} parent=1 // pred_region
      _
    $region5: #{patch_embed_forward.1} parent=1 // pred_fallthru
      _
    // Predicated region
    $region6: #{patch_embed_forward.1} parent=1 // pred_check
      _
    $region7: #{patch_embed_forward.1} parent=1 // pred_check_branch
      %12 = sbr.rel (0) target = $region9
    $region8: #{patch_embed_forward.1} parent=1 // pred_region
      _
    $region9: #{patch_embed_forward.1} parent=1 // pred_fallthru
      _
    // Predicated region
    $region10: #{patch_embed_forward.1} parent=1 // pred_check
      _
    $region11: #{patch_embed_forward.1} parent=1 // pred_check_branch
      %14 = sbr.rel (0) target = $region13
    $region12: #{patch_embed_forward.1} parent=1 // pred_region
      _
    $region13: #{patch_embed_forward.1} parent=1 // pred_fallthru
      _
    %v16 = vld [vmem:[%s0] sm:$0xff]
    %v17 = vld [vmem:[%s0 + $0x8] sm:$0xf]
    %v18 = vld [vmem:[%s0 + $0xc] sm:$0xff]
    %v19 = vld [vmem:[%s0 + $0x14] sm:$0xf]
    %v20 = vld [vmem:[%s1] sm:$0xf]
    %v21 = vld [vmem:[%s1 + $0x4] sm:$0xf]
    %v22 = vld [vmem:[%s1 + $0x8] sm:$0xf]
    %v23 = vld [vmem:[%s1 + $0xc] sm:$0xf]
    %v24 = vld [vmem:[%s1 + $0x10] sm:$0xf]
    %v25 = vld [vmem:[%s1 + $0x14] sm:$0xf]
    %v26 = vld [vmem:[%s1 + $0x18] sm:$0xf]
    %v27 = vld [vmem:[%s1 + $0x1c] sm:$0xf]
    %v28 = vld [vmem:[%s1 + $0x20] sm:$0xf]
    %v29 = vld [vmem:[%s1 + $0x24] sm:$0xf]
    %v30 = vld [vmem:[%s1 + $0x28] sm:$0xf]
    %v31 = vld [vmem:[%s1 + $0x2c] sm:$0xf]
    %v32 = vld [vmem:[%s1 + $0x30] sm:$0xf]
    %v33 = vld [vmem:[%s1 + $0x34] sm:$0xf]
    %v34 = vld [vmem:[%s1 + $0x38] sm:$0xf]
    %v35 = vld [vmem:[%s1 + $0x3c] sm:$0xf]
    %v36 = vld [vmem:[%s1 + $0x40] sm:$0xf]
    %v37 = vld [vmem:[%s1 + $0x44] sm:$0xf]
    %v38 = vld [vmem:[%s1 + $0x48] sm:$0xf]
    %v39 = vld [vmem:[%s1 + $0x4c] sm:$0xf]
    %v40 = vld [vmem:[%s1 + $0x50] sm:$0xf]
    %v41 = vld [vmem:[%s1 + $0x54] sm:$0xf]
    %v42 = vld [vmem:[%s1 + $0x58] sm:$0xf]
    %v43 = vld [vmem:[%s1 + $0x5c] sm:$0xf]
    %v44 = vld [vmem:[%s1 + $0x60] sm:$0xf]
    %v45 = vld [vmem:[%s1 + $0x64] sm:$0xf]
    %v46 = vld [vmem:[%s1 + $0x68] sm:$0xf]
    %v47 = vld [vmem:[%s1 + $0x6c] sm:$0xf]
    %v48 = vld [vmem:[%s1 + $0x70] sm:$0xf]
    %v49 = vld [vmem:[%s1 + $0x74] sm:$0xf]
    %v50 = vld [vmem:[%s1 + $0x78] sm:$0xf]
    %v51 = vld [vmem:[%s1 + $0x7c] sm:$0xf]
    %v52 = vld [vmem:[%s1 + $0x80] sm:$0xf]
    %v53 = vld [vmem:[%s1 + $0x84] sm:$0xf]
    %v54 = vld [vmem:[%s1 + $0x88] sm:$0xf]
    %v55 = vld [vmem:[%s1 + $0x8c] sm:$0xf]
    %v56 = vld [vmem:[%s1 + $0x90] sm:$0xf]
    %v57 = vld [vmem:[%s1 + $0x94] sm:$0xf]
    %v58 = vld [vmem:[%s1 + $0x98] sm:$0xf]
    %v59 = vld [vmem:[%s1 + $0x9c] sm:$0xf]
    %v60 = vld [vmem:[%s1 + $0xa0] sm:$0xf]
    %v61 = vld [vmem:[%s1 + $0xa4] sm:$0xf]
    %v62 = vld [vmem:[%s1 + $0xa8] sm:$0xf]
    %v63 = vld [vmem:[%s1 + $0xac] sm:$0xf]
    %v64 = vld [vmem:[%s1 + $0xb0] sm:$0xf]
    %v65 = vld [vmem:[%s1 + $0xb4] sm:$0xf]
    %v66 = vld [vmem:[%s1 + $0xb8] sm:$0xf]
    %v67 = vld [vmem:[%s1 + $0xbc] sm:$0xf]
    %v68 = vld [vmem:[%s2] sm:$0x1]
    %v70 = vlaneseq
    %v71 = vshrl.u32 %v70, 7
    %v72 = vsub.s32 0, %v71
    %v73 = vrot.slane %v68, %v72
    %v79 = vunpack.c.l.b16 %v16
    %v80 = vunpack.c.h.b16 %v16
    %v81 = vunpack.c.l.b16 %v17
    %v82 = vunpack.c.l.b16 %v18
    %v83 = vunpack.c.h.b16 %v18
    %v84 = vunpack.c.l.b16 %v19
    %v85 = vpack.c.b16 %v82, %v79
    %v86 = vpack.c.b16 %v83, %v80
    %v87 = vpack.c.b16 %v84, %v81
    %v139 = vunpack.c.l.b16 %v20
    %v140 = vunpack.c.l.b16 %v21
    %v141 = vunpack.c.l.b16 %v22
    %v142 = vunpack.c.l.b16 %v23
    %v143 = vunpack.c.l.b16 %v24
    %v144 = vunpack.c.l.b16 %v25
    %v145 = vunpack.c.l.b16 %v26
    %v146 = vunpack.c.l.b16 %v27
    %v147 = vunpack.c.l.b16 %v28
    %v148 = vunpack.c.l.b16 %v29
    %v149 = vunpack.c.l.b16 %v30
    %v150 = vunpack.c.l.b16 %v31
    %v151 = vunpack.c.l.b16 %v32
    %v152 = vunpack.c.l.b16 %v33
    %v153 = vunpack.c.l.b16 %v34
    %v154 = vunpack.c.l.b16 %v35
    %v155 = vunpack.c.l.b16 %v36
    %v156 = vunpack.c.l.b16 %v37
    %v157 = vunpack.c.l.b16 %v38
    %v158 = vunpack.c.l.b16 %v39
    %v159 = vunpack.c.l.b16 %v40
    %v160 = vunpack.c.l.b16 %v41
    %v161 = vunpack.c.l.b16 %v42
    %v162 = vunpack.c.l.b16 %v43
    %v163 = vunpack.c.l.b16 %v44
    %v164 = vunpack.c.l.b16 %v45
    %v165 = vunpack.c.l.b16 %v46
    %v166 = vunpack.c.l.b16 %v47
    %v167 = vunpack.c.l.b16 %v48
    %v168 = vunpack.c.l.b16 %v49
    %v169 = vunpack.c.l.b16 %v50
    %v170 = vunpack.c.l.b16 %v51
    %v171 = vunpack.c.l.b16 %v52
    %v172 = vunpack.c.l.b16 %v53
    %v173 = vunpack.c.l.b16 %v54
    %v174 = vunpack.c.l.b16 %v55
    %v175 = vunpack.c.l.b16 %v56
    %v176 = vunpack.c.l.b16 %v57
    %v177 = vunpack.c.l.b16 %v58
    %v178 = vunpack.c.l.b16 %v59
    %v179 = vunpack.c.l.b16 %v60
    %v180 = vunpack.c.l.b16 %v61
    %v181 = vunpack.c.l.b16 %v62
    %v182 = vunpack.c.l.b16 %v63
    %v183 = vunpack.c.l.b16 %v64
    %v184 = vunpack.c.l.b16 %v65
    %v185 = vunpack.c.l.b16 %v66
    %v186 = vunpack.c.l.b16 %v67
    %v187 = vpack.c.b16 %v140, %v139
    %v188 = vpack.c.b16 %v142, %v141
    %v189 = vpack.c.b16 %v144, %v143
    %v190 = vpack.c.b16 %v146, %v145
    %v191 = vpack.c.b16 %v148, %v147
    %v192 = vpack.c.b16 %v150, %v149
    %v193 = vpack.c.b16 %v152, %v151
    %v194 = vpack.c.b16 %v154, %v153
    %v195 = vpack.c.b16 %v156, %v155
    %v196 = vpack.c.b16 %v158, %v157
    %v197 = vpack.c.b16 %v160, %v159
    %v198 = vpack.c.b16 %v162, %v161
    %v199 = vpack.c.b16 %v164, %v163
    %v200 = vpack.c.b16 %v166, %v165
    %v201 = vpack.c.b16 %v168, %v167
    %v202 = vpack.c.b16 %v170, %v169
    %v203 = vpack.c.b16 %v172, %v171
    %v204 = vpack.c.b16 %v174, %v173
    %v205 = vpack.c.b16 %v176, %v175
    %v206 = vpack.c.b16 %v178, %v177
    %v207 = vpack.c.b16 %v180, %v179
    %v208 = vpack.c.b16 %v182, %v181
    %v209 = vpack.c.b16 %v184, %v183
    %v210 = vpack.c.b16 %v186, %v185
    %235 = vmatprep.subr.bf16.mxu0 0
    %236 = vmatpush1.bf16.msra.mxu0 %v194
    %237 = vmatprep.subr.bf16.mxu0 0
    %238 = vmatpush1.bf16.msra.mxu0 %v193
    %239 = vmatprep.subr.bf16.mxu0 0
    %240 = vmatpush1.bf16.msra.mxu0 %v192
    %241 = vmatprep.subr.bf16.mxu0 0
    %242 = vmatpush1.bf16.msra.mxu0 %v191
    %243 = vmatprep.subr.bf16.mxu0 0
    %244 = vmatpush1.bf16.msra.mxu0 %v190
    %245 = vmatprep.subr.bf16.mxu0 0
    %246 = vmatpush1.bf16.msra.mxu0 %v189
    %247 = vmatprep.subr.bf16.mxu0 0
    %248 = vmatpush1.bf16.msra.mxu0 %v188
    %249 = vmatprep.subr.bf16.mxu0 0
    %250 = vmatpush1.bf16.msra.mxu0 %v187
    %251 = vmatprep.subr.bf16.mxu0 0
    %252 = vmatpush2.bf16.msra.mxu0 %v202
    %253 = vmatprep.subr.bf16.mxu0 0
    %254 = vmatpush2.bf16.msra.mxu0 %v201
    %255 = vmatprep.subr.bf16.mxu0 0
    %256 = vmatpush2.bf16.msra.mxu0 %v200
    %257 = vmatprep.subr.bf16.mxu0 0
    %258 = vmatpush2.bf16.msra.mxu0 %v199
    %259 = vmatprep.subr.bf16.mxu0 0
    %260 = vmatpush2.bf16.msra.mxu0 %v198
    %261 = vmatprep.subr.bf16.mxu0 0
    %262 = vmatpush2.bf16.msra.mxu0 %v197
    %263 = vmatprep.subr.bf16.mxu0 0
    %264 = vmatpush2.bf16.msra.mxu0 %v196
    %265 = vmatprep.subr.bf16.mxu0 0
    %266 = vmatpush2.bf16.msra.mxu0 %v195
    %267 = vmatprep.mubr.bf16.mxu0 %v86
    %268 = vmatmul.mubr.bf16.gmra.mxu0 %v85
    %v269 = vpop.f32.mrf.mxu0
    %v270 = vadd.f32 %v73, %v269
    %v271 = vpop.f32.mrf.mxu0
    %v272 = vpop.f32.mrf.mxu0
    %v273 = vadd.f32 %v73, %v272
    %v274 = vpop.f32.mrf.mxu0
    %275 = vdwg.mxu0
    %276 = vmatprep.subr.bf16.mxu0 0
    %277 = vmatpush1.bf16.msra.mxu0 %v210
    %278 = vmatprep.subr.bf16.mxu0 0
    %279 = vmatpush1.bf16.msra.mxu0 %v209
    %280 = vmatprep.subr.bf16.mxu0 0
    %281 = vmatpush1.bf16.msra.mxu0 %v208
    %282 = vmatprep.subr.bf16.mxu0 0
    %283 = vmatpush1.bf16.msra.mxu0 %v207
    %284 = vmatprep.subr.bf16.mxu0 0
    %285 = vmatpush1.bf16.msra.mxu0 %v206
    %286 = vmatprep.subr.bf16.mxu0 0
    %287 = vmatpush1.bf16.msra.mxu0 %v205
    %288 = vmatprep.subr.bf16.mxu0 0
    %289 = vmatpush1.bf16.msra.mxu0 %v204
    %290 = vmatprep.subr.bf16.mxu0 0
    %291 = vmatpush1.bf16.msra.mxu0 %v203
    %292 = vmatprep.subr.bf16.mxu0 0
    %293 = vmatpush2.bf16.msra.mxu0 0
    %294 = vmatprep.subr.bf16.mxu0 0
    %295 = vmatpush2.bf16.msra.mxu0 0
    %296 = vmatprep.subr.bf16.mxu0 0
    %297 = vmatpush2.bf16.msra.mxu0 0
    %298 = vmatprep.subr.bf16.mxu0 0
    %299 = vmatpush2.bf16.msra.mxu0 0
    %300 = vmatprep.subr.bf16.mxu0 0
    %301 = vmatpush2.bf16.msra.mxu0 0
    %302 = vmatprep.subr.bf16.mxu0 0
    %303 = vmatpush2.bf16.msra.mxu0 0
    %304 = vmatprep.subr.bf16.mxu0 0
    %305 = vmatpush2.bf16.msra.mxu0 0
    %306 = vmatprep.subr.bf16.mxu0 0
    %307 = vmatpush2.bf16.msra.mxu0 0
    %308 = vmatprep.mubr.bf16.mxu0 0
    %309 = vmatmul.mubr.bf16.gmra.mxu0 %v87
    %v310 = vpop.f32.mrf.mxu0
    %v311 = vadd.f32 %v270, %v310
    %v312 = vpop.f32.mrf.mxu0
    %v313 = vpop.f32.mrf.mxu0
    %v314 = vadd.f32 %v273, %v313
    %v315 = vpop.f32.mrf.mxu0
    %316 = vdwg.mxu0
    %317 = vst [vmem:[#allocation2] sm:$0xff] %v311
    %318 = vst [vmem:[#allocation2 + $0x8] sm:$0xff] %v314
    // Predicated region
    $region14: #{patch_embed_forward.1} parent=1 // pred_check
      _
    $region15: #{patch_embed_forward.1} parent=1 // pred_check_branch
      %320 = sbr.rel (0) target = $region17
    $region16: #{patch_embed_forward.1} parent=1 // pred_region
      %s322 = ssub.s32 256, 256
      %323 = vsyncadd [#allocation3], %s322
      %s324 = sshll.u32 [#allocation2], 4
      %s325 = int_to_ptr.vmem [resolvable:$true] %s324
      %330 = dma.vmem_to_hbm [thread:$0]  %s325, 256, %s3, [#allocation3], 128, 128, 8
    $region17: #{patch_embed_forward.1} parent=1 // pred_fallthru
      _
    // Predicated region
    $region18: #{patch_embed_forward.1} parent=1 // pred_check
      _
    $region19: #{patch_embed_forward.1} parent=1 // pred_check_branch
      %332 = sbr.rel (0) target = $region21
    $region20: #{patch_embed_forward.1} parent=1 // pred_region
      %333 = dma.done [#allocation3], 256
    $region21: #{patch_embed_forward.1} parent=1 // pred_fallthru
      _
    %334 = vsyncpa [#allocation3], 1

</llo_original>
